<compile_context>
chip_gen: v6e
topology: v6e:2x2x1
jax: 0.10.0
libtpu: 0.0.40
codegen_flags: <defaults>
</compile_context>

<pallas_src>
import jax
import jax.numpy as jnp
from jax.experimental import pallas as pl
from jax.experimental.pallas import tpu as pltpu

LANE = 128


def _round_up(n, m):
    return (n + m - 1) // m * m


def _pad2d(a, rows, cols):
    r, c = a.shape
    return jnp.pad(a, ((0, rows - r), (0, cols - c)))


def _padded_n_and_tiles(n):
    """Pad node count to a lane-friendly size and pick dst/src tile sizes."""
    n128 = _round_up(max(n, 1), LANE)
    if n128 >= 512:
        tm = tk = 512                    # deep-M tiles for the 256-wide MXU
        n_pad = _round_up(n128, 512)
    else:
        tm = tk = n128                   # single tile for small graphs
        n_pad = n128
    return n_pad, tm, tk


def make_gin_layer_kernel(apply_relu):
    """One GINConv layer: tiled aggregation + fused MLP on the last src step."""

    def kernel(eps_ref, a_ref, h_src_ref, h_dst_ref,
               w1_ref, b1_ref, w2_ref, b2_ref, out_ref, acc_ref):
        k = pl.program_id(1)

        @pl.when(k == 0)
        def _():
            acc_ref[...] = jnp.zeros_like(acc_ref)

        # Aggregation on the MXU: acc += A_hat_tile @ h_src_tile (f32 acc).
        # A_hat tile arrives as int8 edge counts; cast to bf16 here (VPU).
        a_tile = a_ref[...].astype(jnp.float32).astype(jnp.bfloat16)
        acc_ref[...] += jnp.dot(a_tile, h_src_ref[...],
                                preferred_element_type=jnp.float32)

        @pl.when(k == pl.num_programs(1) - 1)
        def _():
            # A_hat = A + I was folded in the wrapper, so acc = agg + x_i.
            # GINConv: (1+eps)*x_i + agg = acc + eps*x_i.
            h = acc_ref[...] + eps_ref[0] * h_dst_ref[...].astype(jnp.float32)
            # MLP: Linear -> ReLU -> Linear (bf16 MXU inputs, f32 accumulate).
            h1 = jnp.dot(h.astype(jnp.bfloat16), w1_ref[...],
                         preferred_element_type=jnp.float32) + b1_ref[...]
            h1 = jnp.maximum(h1, 0.0)
            h2 = jnp.dot(h1.astype(jnp.bfloat16), w2_ref[...],
                         preferred_element_type=jnp.float32) + b2_ref[...]
            if apply_relu:                      # ReLU after all but last layer
                h2 = jnp.maximum(h2, 0.0)
            out_ref[...] = h2.astype(out_ref.dtype)

    return kernel


def gin_conv_layer(h, a_hat_i8, eps, w1, b1, w2, b2, *,
                   apply_relu, out_dtype, tm, tk):
    """Tiled pallas_call for one GINConv layer.

    h:        [Np, Dp_in]  bf16 node features (padded)
    a_hat_i8: [Np, Np]     int8 adjacency-plus-identity (padded)
    eps:      [1]          f32 (SMEM)
    w1/b1/w2/b2: padded MLP params (bf16 weights, f32 (1, D) biases)
    """
    n_pad, d_in = h.shape
    _, h_dim = w1.shape
    _, d_out = w2.shape
    out_isz = jnp.dtype(out_dtype).itemsize
    grid = (n_pad // tm, n_pad // tk)

    # Advisory cost estimate for XLA's scheduler around the custom call.
    flops = (2 * n_pad * n_pad * d_in            # A_hat @ h
             + 2 * n_pad * d_in * h_dim          # Linear 1
             + 2 * n_pad * h_dim * d_out)        # Linear 2
    bytes_accessed = (n_pad * n_pad              # int8 A_hat
                      + 2 * n_pad * d_in * 2     # h (src stream + dst blocks)
                      + 2 * (d_in * h_dim + h_dim * d_out)   # bf16 weights
                      + 4 * (h_dim + d_out)                  # f32 biases
                      + n_pad * d_out * out_isz)             # output

    # Per-step VMEM working set (double-buffered inputs/outputs + scratch).
    vmem = (2 * tm * tk                          # A_hat tile (int8)
            + 2 * tk * d_in * 2                  # h src tile (bf16)
            + 2 * tm * d_in * 2                  # h dst tile (bf16)
            + 2 * (d_in * h_dim * 2 + h_dim * 4 + h_dim * d_out * 2 + d_out * 4)
            + 2 * tm * d_out * out_isz           # output tile
            + tm * d_in * 4)                     # f32 accumulator scratch
    # Headroom, floored at 16 MiB; capped at v7x's 64 MiB physical VMEM
    # (v5e/v6e have 128 MiB, so the cap is conservative there).
    vmem_limit = int(min(64 << 20, max(2 * vmem + (4 << 20), 16 << 20)))

    return pl.pallas_call(
        make_gin_layer_kernel(apply_relu),
        out_shape=jax.ShapeDtypeStruct((n_pad, d_out), out_dtype),
        grid_spec=pltpu.PrefetchScalarGridSpec(
            num_scalar_prefetch=0,
            grid=grid,
            in_specs=[
                pl.BlockSpec(memory_space=pltpu.MemorySpace.SMEM),      # eps
                pl.BlockSpec((tm, tk), lambda i, k: (i, k)),            # A_hat
                pl.BlockSpec((tk, d_in), lambda i, k: (k, 0)),          # h src
                pl.BlockSpec((tm, d_in), lambda i, k: (i, 0)),          # h dst
                pl.BlockSpec((d_in, h_dim), lambda i, k: (0, 0)),       # w1
                pl.BlockSpec((1, h_dim), lambda i, k: (0, 0)),          # b1
                pl.BlockSpec((h_dim, d_out), lambda i, k: (0, 0)),      # w2
                pl.BlockSpec((1, d_out), lambda i, k: (0, 0)),          # b2
            ],
            out_specs=pl.BlockSpec((tm, d_out), lambda i, k: (i, 0)),
            scratch_shapes=[pltpu.VMEM((tm, d_in), jnp.float32)],
        ),
        compiler_params=pltpu.CompilerParams(
            dimension_semantics=("parallel", "arbitrary"),
            vmem_limit_bytes=vmem_limit),
        cost_estimate=pl.CostEstimate(flops=int(flops), transcendentals=0,
                                      bytes_accessed=int(bytes_accessed)),
    )(eps, a_hat_i8, h, h, w1, b1, w2, b2)


def init_gin_params(key, num_features, num_classes, num_layers, hidden_dim):
    """Deterministic init; weights are zero-padded to 128-lane shapes.

    Returns (eps_all [num_layers] f32, list of (w1,b1,w2,b2) padded per layer).
    """
    dims = [(num_features, hidden_dim)]
    dims += [(hidden_dim, hidden_dim)] * (num_layers - 2)
    dims += [(hidden_dim, num_classes)]
    eps_list, layer_weights = [], []
    for d_in, d_out in dims:
        key, k1, k2, k3, k4 = jax.random.split(key, 5)
        w1 = jax.random.normal(k1, (d_in, d_out), jnp.float32) / jnp.sqrt(d_in)
        b1 = jax.random.normal(k2, (d_out,), jnp.float32) * 0.01
        w2 = jax.random.normal(k3, (d_out, d_out), jnp.float32) / jnp.sqrt(d_out)
        b2 = jax.random.normal(k4, (d_out,), jnp.float32) * 0.01
        di_p = _round_up(d_in, LANE)
        do_p = _round_up(d_out, LANE)
        layer_weights.append((
            _pad2d(w1, di_p, do_p).astype(jnp.bfloat16),   # MXU operand
            _pad2d(b1[None, :], 1, do_p),                  # f32 bias [1, do_p]
            _pad2d(w2, do_p, do_p).astype(jnp.bfloat16),   # MXU operand
            _pad2d(b2[None, :], 1, do_p),                  # f32 bias [1, do_p]
        ))
        eps_list.append(0.0)                               # train_eps=True, init 0.0
    return jnp.asarray(eps_list, jnp.float32), layer_weights


def gin_forward(x, adj, root_mask, eps_all, layer_weights, num_classes):
    """Mirrors GIN.forward (inference; dropout = identity).

    x:         [N, num_features]   node features (f32)
    adj:       [N, N]              dense adjacency, adj[dst, src] = multiplicity
    root_mask: [N]                 boolean mask of root nodes
    """
    n, f = x.shape
    n_pad, tm, tk = _padded_n_and_tiles(n)
    f_pad = _round_up(f, LANE)

    # Fold the identity into the adjacency on the real NxN block, then pad and
    # store as int8 edge counts (exact for multiplicities <= 127).
    a_hat = adj + jnp.eye(n, dtype=adj.dtype)
    a_hat_i8 = _pad2d(a_hat, n_pad, n_pad).astype(jnp.int8)

    h = _pad2d(x, n_pad, f_pad).astype(jnp.bfloat16)
    num_layers = len(layer_weights)
    for l, (w1, b1, w2, b2) in enumerate(layer_weights):
        last = (l == num_layers - 1)
        h = gin_conv_layer(
            h, a_hat_i8, eps_all[l:l + 1], w1, b1, w2, b2,
            apply_relu=not last,
            out_dtype=jnp.float32 if last else jnp.bfloat16,
            tm=tm, tk=tk)

    out = h[:n, :num_classes]
    # TODO(synk): x[root_mask] is a data-dependent-shape boolean gather; kept
    # as eager JAX glue (use a fixed-size index gather to make it jittable).
    return out[root_mask]


if __name__ == "__main__":
    key = jax.random.PRNGKey(0)

    # Small synthetic graph consistent with the module's forward.
    num_nodes = 32
    num_edges = 64
    num_features = 16
    hidden_dim = 32
    num_classes = 8
    num_layers = 3

    kx, ke, km, kp = jax.random.split(key, 4)
    x = jax.random.normal(kx, (num_nodes, num_features), jnp.float32)

    # edge_index: [2, E] (src, dst); dense adjacency A[dst, src] += 1
    edge_index = jax.random.randint(ke, (2, num_edges), 0, num_nodes)
    adj = jnp.zeros((num_nodes, num_nodes), jnp.float32).at[
        edge_index[1], edge_index[0]].add(1.0)
    # int8 adjacency storage is exact only for small integer multiplicities.
    assert float(jnp.max(adj)) <= 126.0

    # root_mask: mark a few root nodes
    root_mask = jnp.zeros((num_nodes,), jnp.bool_).at[
        jax.random.choice(km, num_nodes, (4,), replace=False)].set(True)

    eps_all, layer_weights = init_gin_params(
        kp, num_features, num_classes, num_layers, hidden_dim)

    out = gin_forward(x, adj, root_mask, eps_all, layer_weights, num_classes)
    out = jax.block_until_ready(out)

    assert out.shape == (4, num_classes)
    assert bool(jnp.all(jnp.isfinite(out)))
    print("KERNEL_OK")
</pallas_src>

<mosaic_0001>
module attributes {stable_mosaic.version = 11 : i64} {
  func.func @kernel(%arg0: i32, %arg1: i32, %arg2: memref<1xf32, #tpu.memory_space<smem>>, %arg3: memref<128x128xi8, #tpu.memory_space<vmem>>, %arg4: memref<128x128xbf16, #tpu.memory_space<vmem>>, %arg5: memref<128x128xbf16, #tpu.memory_space<vmem>>, %arg6: memref<128x128xbf16, #tpu.memory_space<vmem>>, %arg7: memref<1x128xf32, #tpu.memory_space<vmem>>, %arg8: memref<128x128xbf16, #tpu.memory_space<vmem>>, %arg9: memref<1x128xf32, #tpu.memory_space<vmem>>, %arg10: memref<128x128xbf16, #tpu.memory_space<vmem>>, %arg11: memref<128x128xf32, #tpu.memory_space<vmem>>) attributes {dimension_semantics = [#tpu.dimension_semantics<parallel>, #tpu.dimension_semantics<arbitrary>], iteration_bounds = array<i64: 1, 1>, scalar_prefetch = 0 : i64, scratch_operands = 1 : i64, tpu.core_type = #tpu.core_type<tc>, window_params = [{transform_indices = @transform_0, window_bounds = array<i64: 1>}, {transform_indices = @transform_1, window_bounds = array<i64: 128, 128>}, {transform_indices = @transform_2, window_bounds = array<i64: 128, 128>}, {transform_indices = @transform_3, window_bounds = array<i64: 128, 128>}, {pipeline_mode = #tpu.pipeline_mode<synchronous>, transform_indices = @transform_4, window_bounds = array<i64: 128, 128>}, {pipeline_mode = #tpu.pipeline_mode<synchronous>, transform_indices = @transform_5, window_bounds = array<i64: 1, 128>}, {pipeline_mode = #tpu.pipeline_mode<synchronous>, transform_indices = @transform_6, window_bounds = array<i64: 128, 128>}, {pipeline_mode = #tpu.pipeline_mode<synchronous>, transform_indices = @transform_7, window_bounds = array<i64: 1, 128>}, {transform_indices = @transform_8, window_bounds = array<i64: 128, 128>}]} {
    %c0_i32 = arith.constant 0 : i32
    %0 = arith.cmpi eq, %arg1, %c0_i32 : i32
    %1 = arith.extui %0 : i1 to i32
    %c0_i32_0 = arith.constant 0 : i32
    %2 = arith.cmpi ne, %1, %c0_i32_0 : i32
    scf.if %2 {
      %cst_10 = arith.constant 0.000000e+00 : f32
      %14 = vector.broadcast %cst_10 : f32 to vector<128x128xf32>
      %c0_11 = arith.constant 0 : index
      %c0_12 = arith.constant 0 : index
      %15 = vector.load %arg11[%c0_11, %c0_12] : memref<128x128xf32, #tpu.memory_space<vmem>>, vector<128x128xf32>
      tpu.vector_store %arg11[%c0_11, %c0_12], %14 {strides = array<i32>} : memref<128x128xf32, #tpu.memory_space<vmem>>, vector<128x128xf32>,
    } else {
    }
    %c0 = arith.constant 0 : index
    %c0_1 = arith.constant 0 : index
    %3 = vector.load %arg3[%c0, %c0_1] : memref<128x128xi8, #tpu.memory_space<vmem>>, vector<128x128xi8>
    %4 = arith.sitofp %3 : vector<128x128xi8> to vector<128x128xf32>
    %5 = arith.truncf %4 : vector<128x128xf32> to vector<128x128xbf16>
    %c0_2 = arith.constant 0 : index
    %c0_3 = arith.constant 0 : index
    %6 = vector.load %arg11[%c0_2, %c0_3] : memref<128x128xf32, #tpu.memory_space<vmem>>, vector<128x128xf32>
    %c0_4 = arith.constant 0 : index
    %c0_5 = arith.constant 0 : index
    %7 = vector.load %arg4[%c0_4, %c0_5] : memref<128x128xbf16, #tpu.memory_space<vmem>>, vector<128x128xbf16>
    %cst = arith.constant dense<0.000000e+00> : vector<128x128xf32>
    %8 = tpu.matmul %5, %7, %cst {dimension_numbers = #tpu.dot_dimension_numbers<[1], [0], [0], [1], [0, 0, 1, 1], [], []>} : vector<128x128xbf16>, vector<128x128xbf16>, vector<128x128xf32> -> vector<128x128xf32>
    %9 = arith.addf %6, %8 : vector<128x128xf32>
    %c0_6 = arith.constant 0 : index
    %c0_7 = arith.constant 0 : index
    %10 = vector.load %arg11[%c0_6, %c0_7] : memref<128x128xf32, #tpu.memory_space<vmem>>, vector<128x128xf32>
    tpu.vector_store %arg11[%c0_6, %c0_7], %9 {strides = array<i32>} : memref<128x128xf32, #tpu.memory_space<vmem>>, vector<128x128xf32>,
    %c0_i32_8 = arith.constant 0 : i32
    %11 = arith.cmpi eq, %arg1, %c0_i32_8 : i32
    %12 = arith.extui %11 : i1 to i32
    %c0_i32_9 = arith.constant 0 : i32
    %13 = arith.cmpi ne, %12, %c0_i32_9 : i32
    scf.if %13 {
      %c0_10 = arith.constant 0 : index
      %c0_11 = arith.constant 0 : index
      %14 = vector.load %arg11[%c0_10, %c0_11] : memref<128x128xf32, #tpu.memory_space<vmem>>, vector<128x128xf32>
      %c0_12 = arith.constant 0 : index
      %15 = memref.load %arg2[%c0_12] : memref<1xf32, #tpu.memory_space<smem>>
      %c0_13 = arith.constant 0 : index
      %c0_14 = arith.constant 0 : index
      %16 = vector.load %arg5[%c0_13, %c0_14] : memref<128x128xbf16, #tpu.memory_space<vmem>>, vector<128x128xbf16>
      %17 = arith.extf %16 : vector<128x128xbf16> to vector<128x128xf32>
      %18 = vector.broadcast %15 : f32 to vector<128x128xf32>
      %19 = arith.mulf %18, %17 : vector<128x128xf32>
      %20 = arith.addf %14, %19 : vector<128x128xf32>
      %21 = arith.truncf %20 : vector<128x128xf32> to vector<128x128xbf16>
      %c0_15 = arith.constant 0 : index
      %c0_16 = arith.constant 0 : index
      %22 = vector.load %arg6[%c0_15, %c0_16] : memref<128x128xbf16, #tpu.memory_space<vmem>>, vector<128x128xbf16>
      %cst_17 = arith.constant dense<0.000000e+00> : vector<128x128xf32>
      %23 = tpu.matmul %21, %22, %cst_17 {dimension_numbers = #tpu.dot_dimension_numbers<[1], [0], [0], [1], [0, 0, 1, 1], [], []>} : vector<128x128xbf16>, vector<128x128xbf16>, vector<128x128xf32> -> vector<128x128xf32>
      %c0_18 = arith.constant 0 : index
      %c0_19 = arith.constant 0 : index
      %24 = vector.load %arg7[%c0_18, %c0_19] : memref<1x128xf32, #tpu.memory_space<vmem>>, vector<1x128xf32>
      %25 = vector.broadcast %24 : vector<1x128xf32> to vector<128x128xf32>
      %26 = arith.addf %23, %25 : vector<128x128xf32>
      %cst_20 = arith.constant 0.000000e+00 : f32
      %27 = vector.broadcast %cst_20 : f32 to vector<128x128xf32>
      %28 = arith.maximumf %26, %27 : vector<128x128xf32>
      %29 = arith.truncf %28 : vector<128x128xf32> to vector<128x128xbf16>
      %c0_21 = arith.constant 0 : index
      %c0_22 = arith.constant 0 : index
      %30 = vector.load %arg8[%c0_21, %c0_22] : memref<128x128xbf16, #tpu.memory_space<vmem>>, vector<128x128xbf16>
      %cst_23 = arith.constant dense<0.000000e+00> : vector<128x128xf32>
      %31 = tpu.matmul %29, %30, %cst_23 {dimension_numbers = #tpu.dot_dimension_numbers<[1], [0], [0], [1], [0, 0, 1, 1], [], []>} : vector<128x128xbf16>, vector<128x128xbf16>, vector<128x128xf32> -> vector<128x128xf32>
      %c0_24 = arith.constant 0 : index
      %c0_25 = arith.constant 0 : index
      %32 = vector.load %arg9[%c0_24, %c0_25] : memref<1x128xf32, #tpu.memory_space<vmem>>, vector<1x128xf32>
      %33 = vector.broadcast %32 : vector<1x128xf32> to vector<128x128xf32>
      %34 = arith.addf %31, %33 : vector<128x128xf32>
      %cst_26 = arith.constant 0.000000e+00 : f32
      %35 = vector.broadcast %cst_26 : f32 to vector<128x128xf32>
      %36 = arith.maximumf %34, %35 : vector<128x128xf32>
      %37 = arith.truncf %36 : vector<128x128xf32> to vector<128x128xbf16>
      %c0_27 = arith.constant 0 : index
      %c0_28 = arith.constant 0 : index
      %38 = vector.load %arg10[%c0_27, %c0_28] : memref<128x128xbf16, #tpu.memory_space<vmem>>, vector<128x128xbf16>
      tpu.vector_store %arg10[%c0_27, %c0_28], %37 {strides = array<i32>} : memref<128x128xbf16, #tpu.memory_space<vmem>>, vector<128x128xbf16>,
    } else {
    }
    return
  }
  func.func @transform_0(%arg0: i32, %arg1: i32) -> i32 {
    %c0_i32 = arith.constant 0 : i32
    %c0_i32_0 = arith.constant 0 : i32
    return %c0_i32 : i32
  }
  func.func @transform_1(%arg0: i32, %arg1: i32) -> (i32, i32) {
    %c0_i32 = arith.constant 0 : i32
    return %arg0, %arg1 : i32, i32
  }
  func.func @transform_2(%arg0: i32, %arg1: i32) -> (i32, i32) {
    %c0_i32 = arith.constant 0 : i32
    %c0_i32_0 = arith.constant 0 : i32
    return %arg1, %c0_i32 : i32, i32
  }
  func.func @transform_3(%arg0: i32, %arg1: i32) -> (i32, i32) {
    %c0_i32 = arith.constant 0 : i32
    %c0_i32_0 = arith.constant 0 : i32
    return %arg0, %c0_i32 : i32, i32
  }
  func.func @transform_4(%arg0: i32, %arg1: i32) -> (i32, i32) {
    %c0_i32 = arith.constant 0 : i32
    %c0_i32_0 = arith.constant 0 : i32
    %c0_i32_1 = arith.constant 0 : i32
    return %c0_i32, %c0_i32_0 : i32, i32
  }
  func.func @transform_5(%arg0: i32, %arg1: i32) -> (i32, i32) {
    %c0_i32 = arith.constant 0 : i32
    %c0_i32_0 = arith.constant 0 : i32
    %c0_i32_1 = arith.constant 0 : i32
    return %c0_i32, %c0_i32_0 : i32, i32
  }
  func.func @transform_6(%arg0: i32, %arg1: i32) -> (i32, i32) {
    %c0_i32 = arith.constant 0 : i32
    %c0_i32_0 = arith.constant 0 : i32
    %c0_i32_1 = arith.constant 0 : i32
    return %c0_i32, %c0_i32_0 : i32, i32
  }
  func.func @transform_7(%arg0: i32, %arg1: i32) -> (i32, i32) {
    %c0_i32 = arith.constant 0 : i32
    %c0_i32_0 = arith.constant 0 : i32
    %c0_i32_1 = arith.constant 0 : i32
    return %c0_i32, %c0_i32_0 : i32, i32
  }
  func.func @transform_8(%arg0: i32, %arg1: i32) -> (i32, i32) {
    %c0_i32 = arith.constant 0 : i32
    %c0_i32_0 = arith.constant 0 : i32
    return %arg0, %c0_i32 : i32, i32
  }
}

</mosaic_0001>

<llo_original>
// kernel: tpu_custom_call.1
$region0: #{tpu_custom_call.1}
  #allocation0 [shape = 'u32[]', space=smem, size = 0x4, offset = 0x4, fixed_abs, tag = 'smem constant byte address 0x4 - core index']
  #allocation1 [shape = 'u32[144,128]{1,0:T(1,128)}', space=vmem, size = 0x12000, scoped, tag = 'internal scratch']
  #allocation2 [shape = 'f32[128,128]{1,0:T(8,128)}', space=vmem, size = 0x10000, scoped, tag = 'scratch operand']
  #allocation3 [shape = 'f32[1]{0:T(128)S(6)}', space=smem, size = 0x200, scoped, tag = 'scoped memory for tpu_custom_call.1']
  %s0 = inlined_call_operand.<no memory space> [shape: f32[1], index: 0, kind: input, shape index: {}]
  %s1 = inlined_call_operand.hbm [shape: s8[128,128], index: 1, kind: input, shape index: {}]
  %s2 = inlined_call_operand.hbm [shape: bf16[128,128], index: 2, kind: input, shape index: {}]
  %s3 = inlined_call_operand.hbm [shape: bf16[128,128], index: 3, kind: input, shape index: {}]
  %s4 = inlined_call_operand.hbm [shape: bf16[128,128], index: 4, kind: input, shape index: {}]
  %s5 = inlined_call_operand.vmem [shape: f32[1,128], index: 5, kind: input, shape index: {}]
  %s6 = inlined_call_operand.hbm [shape: bf16[128,128], index: 6, kind: input, shape index: {}]
  %s7 = inlined_call_operand.vmem [shape: f32[1,128], index: 7, kind: input, shape index: {}]
  %s8 = inlined_call_operand.hbm [shape: bf16[128,128], index: 8, kind: output, shape index: {}]
  %s9 = sld [smem:[#allocation0]]
  $region70: #{tpu_custom_call.1} parent=0
    _
  %s11 = ssub.s32 1, %s9
  %s12 = scalar_select 0, %s11, %s9
  %13 = sst [smem:[#allocation3]] %s0
  $region1: #{tpu_custom_call.1} parent=0
    #allocation4 [shape = 'u8[16384]{0}', space=vmem, size = 0x4000, scoped, tag = 'input window, operand 1, single buffered']
    #allocation5 [shape = 's32[1]{0}', space=sflag, size = 0x4, scoped, tag = 'scoped memory for tpu_custom_call.1']
    #allocation6 [shape = 's32[1]{0}', space=sflag, size = 0x4, scoped, tag = 'scoped memory for tpu_custom_call.1']
    #allocation7 [shape = 'u8[32768]{0}', space=vmem, size = 0x8000, scoped, tag = 'input window, operand 2, single buffered']
    #allocation8 [shape = 's32[1]{0}', space=sflag, size = 0x4, scoped, tag = 'scoped memory for tpu_custom_call.1']
    #allocation9 [shape = 'u8[32768]{0}', space=vmem, size = 0x8000, scoped, tag = 'input window, operand 3, single buffered']
    #allocation10 [shape = 'u8[32768]{0}', space=vmem, size = 0x8000, scoped, tag = 'input window, operand 4, single buffered']
    #allocation11 [shape = 's32[1]{0}', space=sflag, size = 0x4, scoped, tag = 'scoped memory for tpu_custom_call.1']
    #allocation12 [shape = 'u8[32768]{0}', space=vmem, size = 0x8000, scoped, tag = 'input window, operand 6, single buffered']
    #allocation13 [shape = 'u8[32768]{0}', space=vmem, size = 0x8000, scoped, tag = 'output window, operand 0, single buffered']
    %14 = vsyncpa [#allocation5], 0
    %15 = vsyncpa [#allocation8], 0
    %16 = vsyncpa [#allocation11], 0
    %17 = vsyncpa [#allocation6], 0
    // Predicated region
    $region2: #{tpu_custom_call.1} parent=1 // pred_check
      _
    $region3: #{tpu_custom_call.1} parent=1 // pred_check_branch
      %19 = sbr.rel (0) target = $region5
    $region4: #{tpu_custom_call.1} parent=1 // pred_region
      _
    $region5: #{tpu_custom_call.1} parent=1 // pred_fallthru
      _
    // Predicated region
    $region6: #{tpu_custom_call.1} parent=1 // pred_check
      _
    $region7: #{tpu_custom_call.1} parent=1 // pred_check_branch
      %21 = sbr.rel (0) target = $region9
    $region8: #{tpu_custom_call.1} parent=1 // pred_region
      %s23 = ssub.s32 512, 512
      %24 = vsyncadd [#allocation5], %s23
      %s25 = sshll.u32 [#allocation4], 4
      %s26 = int_to_ptr.vmem [resolvable:$true] %s25
      %31 = dma.hbm_to_vmem [thread:$0]  %s1, 512, %s26, [#allocation5], 128, 128, 8
    $region9: #{tpu_custom_call.1} parent=1 // pred_fallthru
      _
    // Predicated region
    $region10: #{tpu_custom_call.1} parent=1 // pred_check
      _
    $region11: #{tpu_custom_call.1} parent=1 // pred_check_branch
      %33 = sbr.rel (0) target = $region13
    $region12: #{tpu_custom_call.1} parent=1 // pred_region
      %s35 = ssub.s32 1024, 1024
      %36 = vsyncadd [#allocation8], %s35
      %s37 = sshll.u32 [#allocation7], 4
      %s38 = int_to_ptr.vmem [resolvable:$true] %s37
      %43 = dma.hbm_to_vmem [thread:$0]  %s2, 1024, %s38, [#allocation8], 64, 64, 4
    $region13: #{tpu_custom_call.1} parent=1 // pred_fallthru
      _
    // Predicated region
    $region14: #{tpu_custom_call.1} parent=1 // pred_check
      _
    $region15: #{tpu_custom_call.1} parent=1 // pred_check_branch
      %45 = sbr.rel (0) target = $region17
    $region16: #{tpu_custom_call.1} parent=1 // pred_region
      %s47 = ssub.s32 1024, 1024
      %48 = vsyncadd [#allocation8], %s47
      %s49 = sshll.u32 [#allocation9], 4
      %s50 = int_to_ptr.vmem [resolvable:$true] %s49
      %55 = dma.hbm_to_vmem [thread:$0]  %s3, 1024, %s50, [#allocation8], 64, 64, 4
    $region17: #{tpu_custom_call.1} parent=1 // pred_fallthru
      _
    // Predicated region
    $region18: #{tpu_custom_call.1} parent=1 // pred_check
      _
    $region19: #{tpu_custom_call.1} parent=1 // pred_check_branch
      %57 = sbr.rel (0) target = $region21
    $region20: #{tpu_custom_call.1} parent=1 // pred_region
      %s59 = ssub.s32 1024, 1024
      %60 = vsyncadd [#allocation11], %s59
      %s61 = sshll.u32 [#allocation10], 4
      %s62 = int_to_ptr.vmem [resolvable:$true] %s61
      %67 = dma.hbm_to_vmem [thread:$0]  %s4, 1024, %s62, [#allocation11], 64, 64, 4
    $region21: #{tpu_custom_call.1} parent=1 // pred_fallthru
      _
    // Predicated region
    $region22: #{tpu_custom_call.1} parent=1 // pred_check
      _
    $region23: #{tpu_custom_call.1} parent=1 // pred_check_branch
      %69 = sbr.rel (0) target = $region25
    $region24: #{tpu_custom_call.1} parent=1 // pred_region
      _
    $region25: #{tpu_custom_call.1} parent=1 // pred_fallthru
      _
    // Predicated region
    $region26: #{tpu_custom_call.1} parent=1 // pred_check
      _
    $region27: #{tpu_custom_call.1} parent=1 // pred_check_branch
      %71 = sbr.rel (0) target = $region29
    $region28: #{tpu_custom_call.1} parent=1 // pred_region
      %s73 = ssub.s32 1024, 1024
      %74 = vsyncadd [#allocation11], %s73
      %s75 = sshll.u32 [#allocation12], 4
      %s76 = int_to_ptr.vmem [resolvable:$true] %s75
      %81 = dma.hbm_to_vmem [thread:$0]  %s6, 1024, %s76, [#allocation11], 64, 64, 4
    $region29: #{tpu_custom_call.1} parent=1 // pred_fallthru
      _
    // Predicated region
    $region30: #{tpu_custom_call.1} parent=1 // pred_check
      _
    $region31: #{tpu_custom_call.1} parent=1 // pred_check_branch
      %83 = sbr.rel (0) target = $region33
    $region32: #{tpu_custom_call.1} parent=1 // pred_region
      _
    $region33: #{tpu_custom_call.1} parent=1 // pred_fallthru
      _
    // Predicated region
    $region34: #{tpu_custom_call.1} parent=1 // pred_check
      _
    $region35: #{tpu_custom_call.1} parent=1 // pred_check_branch
      %85 = sbr.rel (0) target = $region37
    $region36: #{tpu_custom_call.1} parent=1 // pred_region
      %86 = dma.done [#allocation5], 512
    $region37: #{tpu_custom_call.1} parent=1 // pred_fallthru
      _
    // Predicated region
    $region38: #{tpu_custom_call.1} parent=1 // pred_check
      _
    $region39: #{tpu_custom_call.1} parent=1 // pred_check_branch
      %88 = sbr.rel (0) target = $region41
    $region40: #{tpu_custom_call.1} parent=1 // pred_region
      %89 = dma.done [#allocation8], 1024
    $region41: #{tpu_custom_call.1} parent=1 // pred_fallthru
      _
    // Predicated region
    $region42: #{tpu_custom_call.1} parent=1 // pred_check
      _
    $region43: #{tpu_custom_call.1} parent=1 // pred_check_branch
      %91 = sbr.rel (0) target = $region45
    $region44: #{tpu_custom_call.1} parent=1 // pred_region
      %92 = dma.done [#allocation8], 1024
    $region45: #{tpu_custom_call.1} parent=1 // pred_fallthru
      _
    // Predicated region
    $region46: #{tpu_custom_call.1} parent=1 // pred_check
      _
    $region47: #{tpu_custom_call.1} parent=1 // pred_check_branch
      %94 = sbr.rel (0) target = $region49
    $region48: #{tpu_custom_call.1} parent=1 // pred_region
      %95 = dma.done [#allocation11], 1024
    $region49: #{tpu_custom_call.1} parent=1 // pred_fallthru
      _
    // Predicated region
    $region50: #{tpu_custom_call.1} parent=1 // pred_check
      _
    $region51: #{tpu_custom_call.1} parent=1 // pred_check_branch
      %97 = sbr.rel (0) target = $region53
    $region52: #{tpu_custom_call.1} parent=1 // pred_region
      %98 = dma.done [#allocation11], 1024
    $region53: #{tpu_custom_call.1} parent=1 // pred_fallthru
      _
    %p100 = scmp.eq.s32.totalorder 0, 0
    // Predicated region
    $region54: #{tpu_custom_call.1} parent=1 // pred_check
      %p101 = pneg %p100
    $region55: #{tpu_custom_call.1} parent=1 // pred_check_branch
      %103 = sbr.rel (%p101) target = $region57
    $region56: #{tpu_custom_call.1} parent=1 // pred_region
      %104 = vst [vmem:[#allocation2] sm:$0xff] 0.0
      %105 = vst [vmem:[#allocation2 + $0x8] sm:$0xff] 0.0
      %106 = vst [vmem:[#allocation2 + $0x10] sm:$0xff] 0.0
      %107 = vst [vmem:[#allocation2 + $0x18] sm:$0xff] 0.0
      %108 = vst [vmem:[#allocation2 + $0x20] sm:$0xff] 0.0
      %109 = vst [vmem:[#allocation2 + $0x28] sm:$0xff] 0.0
      %110 = vst [vmem:[#allocation2 + $0x30] sm:$0xff] 0.0
      %111 = vst [vmem:[#allocation2 + $0x38] sm:$0xff] 0.0
      %112 = vst [vmem:[#allocation2 + $0x40] sm:$0xff] 0.0
      %113 = vst [vmem:[#allocation2 + $0x48] sm:$0xff] 0.0
      %114 = vst [vmem:[#allocation2 + $0x50] sm:$0xff] 0.0
      %115 = vst [vmem:[#allocation2 + $0x58] sm:$0xff] 0.0
      %116 = vst [vmem:[#allocation2 + $0x60] sm:$0xff] 0.0
      %117 = vst [vmem:[#allocation2 + $0x68] sm:$0xff] 0.0
      %118 = vst [vmem:[#allocation2 + $0x70] sm:$0xff] 0.0
      %119 = vst [vmem:[#allocation2 + $0x78] sm:$0xff] 0.0
    $region57: #{tpu_custom_call.1} parent=1 // pred_fallthru
      _
    %v120 = vld [vmem:[#allocation4] sm:$0xff]
    %v121 = vld [vmem:[#allocation4 + $0x8] sm:$0xff]
    %v122 = vld [vmem:[#allocation4 + $0x10] sm:$0xff]
    %v123 = vld [vmem:[#allocation4 + $0x18] sm:$0xff]
    %v124 = vunpack.c.l.s8.bf16 %v120
    %v125 = vunpack.c.h.s8.bf16 %v120
    %v126 = vunpack.c.l.s8.bf16 %v121
    %v127 = vunpack.c.h.s8.bf16 %v121
    %v128 = vunpack.c.l.s8.bf16 %v122
    %v129 = vunpack.c.h.s8.bf16 %v122
    %v130 = vunpack.c.l.s8.bf16 %v123
    %v131 = vunpack.c.h.s8.bf16 %v123
    %v132 = vld [vmem:[#allocation2] sm:$0xff]
    %v133 = vld [vmem:[#allocation2 + $0x8] sm:$0xff]
    %v134 = vld [vmem:[#allocation2 + $0x10] sm:$0xff]
    %v135 = vld [vmem:[#allocation2 + $0x18] sm:$0xff]
    %v136 = vld [vmem:[#allocation2 + $0x20] sm:$0xff]
    %v137 = vld [vmem:[#allocation2 + $0x28] sm:$0xff]
    %v138 = vld [vmem:[#allocation2 + $0x30] sm:$0xff]
    %v139 = vld [vmem:[#allocation2 + $0x38] sm:$0xff]
    %v140 = vld [vmem:[#allocation2 + $0x40] sm:$0xff]
    %v141 = vld [vmem:[#allocation2 + $0x48] sm:$0xff]
    %v142 = vld [vmem:[#allocation2 + $0x50] sm:$0xff]
    %v143 = vld [vmem:[#allocation2 + $0x58] sm:$0xff]
    %v144 = vld [vmem:[#allocation2 + $0x60] sm:$0xff]
    %v145 = vld [vmem:[#allocation2 + $0x68] sm:$0xff]
    %v146 = vld [vmem:[#allocation2 + $0x70] sm:$0xff]
    %v147 = vld [vmem:[#allocation2 + $0x78] sm:$0xff]
    %v148 = vld [vmem:[#allocation7] sm:$0xf]
    %v149 = vld [vmem:[#allocation7 + $0x4] sm:$0xf]
    %v150 = vld [vmem:[#allocation7 + $0x8] sm:$0xf]
    %v151 = vld [vmem:[#allocation7 + $0xc] sm:$0xf]
    %v152 = vld [vmem:[#allocation7 + $0x10] sm:$0xf]
    %v153 = vld [vmem:[#allocation7 + $0x14] sm:$0xf]
    %v154 = vld [vmem:[#allocation7 + $0x18] sm:$0xf]
    %v155 = vld [vmem:[#allocation7 + $0x1c] sm:$0xf]
    %v156 = vld [vmem:[#allocation7 + $0x20] sm:$0xf]
    %v157 = vld [vmem:[#allocation7 + $0x24] sm:$0xf]
    %v158 = vld [vmem:[#allocation7 + $0x28] sm:$0xf]
    %v159 = vld [vmem:[#allocation7 + $0x2c] sm:$0xf]
    %v160 = vld [vmem:[#allocation7 + $0x30] sm:$0xf]
    %v161 = vld [vmem:[#allocation7 + $0x34] sm:$0xf]
    %v162 = vld [vmem:[#allocation7 + $0x38] sm:$0xf]
    %v163 = vld [vmem:[#allocation7 + $0x3c] sm:$0xf]
    %v180 = vunpack.c.l.b16 %v148
    %v181 = vunpack.c.l.b16 %v149
    %v182 = vunpack.c.l.b16 %v150
    %v183 = vunpack.c.l.b16 %v151
    %v184 = vunpack.c.l.b16 %v152
    %v185 = vunpack.c.l.b16 %v153
    %v186 = vunpack.c.l.b16 %v154
    %v187 = vunpack.c.l.b16 %v155
    %v188 = vunpack.c.l.b16 %v156
    %v189 = vunpack.c.l.b16 %v157
    %v190 = vunpack.c.l.b16 %v158
    %v191 = vunpack.c.l.b16 %v159
    %v192 = vunpack.c.l.b16 %v160
    %v193 = vunpack.c.l.b16 %v161
    %v194 = vunpack.c.l.b16 %v162
    %v195 = vunpack.c.l.b16 %v163
    %v196 = vpack.c.b16 %v181, %v180
    %v197 = vpack.c.b16 %v183, %v182
    %v198 = vpack.c.b16 %v185, %v184
    %v199 = vpack.c.b16 %v187, %v186
    %v200 = vpack.c.b16 %v189, %v188
    %v201 = vpack.c.b16 %v191, %v190
    %v202 = vpack.c.b16 %v193, %v192
    %v203 = vpack.c.b16 %v195, %v194
    %212 = vmatprep.subr.bf16.mxu0 0
    %213 = vmatpush1.bf16.msra.mxu0 %v203
    %214 = vmatprep.subr.bf16.mxu0 0
    %215 = vmatpush1.bf16.msra.mxu0 %v202
    %216 = vmatprep.subr.bf16.mxu0 0
    %217 = vmatpush1.bf16.msra.mxu0 %v201
    %218 = vmatprep.subr.bf16.mxu0 0
    %219 = vmatpush1.bf16.msra.mxu0 %v200
    %220 = vmatprep.subr.bf16.mxu0 0
    %221 = vmatpush1.bf16.msra.mxu0 %v199
    %222 = vmatprep.subr.bf16.mxu0 0
    %223 = vmatpush1.bf16.msra.mxu0 %v198
    %224 = vmatprep.subr.bf16.mxu0 0
    %225 = vmatpush1.bf16.msra.mxu0 %v197
    %226 = vmatprep.subr.bf16.mxu0 0
    %227 = vmatpush1.bf16.msra.mxu0 %v196
    %228 = vmatprep.subr.bf16.mxu0 0
    %229 = vmatpush2.bf16.msra.mxu0 0
    %230 = vmatprep.subr.bf16.mxu0 0
    %231 = vmatpush2.bf16.msra.mxu0 0
    %232 = vmatprep.subr.bf16.mxu0 0
    %233 = vmatpush2.bf16.msra.mxu0 0
    %234 = vmatprep.subr.bf16.mxu0 0
    %235 = vmatpush2.bf16.msra.mxu0 0
    %236 = vmatprep.subr.bf16.mxu0 0
    %237 = vmatpush2.bf16.msra.mxu0 0
    %238 = vmatprep.subr.bf16.mxu0 0
    %239 = vmatpush2.bf16.msra.mxu0 0
    %240 = vmatprep.subr.bf16.mxu0 0
    %241 = vmatpush2.bf16.msra.mxu0 0
    %242 = vmatprep.subr.bf16.mxu0 0
    %243 = vmatpush2.bf16.msra.mxu0 0
    %244 = vmatprep.mubr.bf16.mxu0 0
    %245 = vmatmul.mubr.bf16.gmra.mxu0 %v124
    %v246 = vpop.f32.mrf.mxu0
    %v247 = vadd.f32 0.0, %v246
    %v248 = vpop.f32.mrf.mxu0
    %v249 = vpop.f32.mrf.mxu0
    %v250 = vadd.f32 0.0, %v249
    %v251 = vpop.f32.mrf.mxu0
    %252 = vmatprep.mubr.bf16.mxu0 0
    %253 = vmatmul.mubr.bf16.gmra.mxu0 %v125
    %v254 = vpop.f32.mrf.mxu0
    %v255 = vadd.f32 0.0, %v254
    %v256 = vpop.f32.mrf.mxu0
    %v257 = vpop.f32.mrf.mxu0
    %v258 = vadd.f32 0.0, %v257
    %v259 = vpop.f32.mrf.mxu0
    %260 = vmatprep.mubr.bf16.mxu0 0
    %261 = vmatmul.mubr.bf16.gmra.mxu0 %v126
    %v262 = vpop.f32.mrf.mxu0
    %v263 = vadd.f32 0.0, %v262
    %v264 = vpop.f32.mrf.mxu0
    %v265 = vpop.f32.mrf.mxu0
    %v266 = vadd.f32 0.0, %v265
    %v267 = vpop.f32.mrf.mxu0
    %268 = vmatprep.mubr.bf16.mxu0 0
    %269 = vmatmul.mubr.bf16.gmra.mxu0 %v127
    %v270 = vpop.f32.mrf.mxu0
    %v271 = vadd.f32 0.0, %v270
    %v272 = vpop.f32.mrf.mxu0
    %v273 = vpop.f32.mrf.mxu0
    %v274 = vadd.f32 0.0, %v273
    %v275 = vpop.f32.mrf.mxu0
    %276 = vmatprep.mubr.bf16.mxu0 0
    %277 = vmatmul.mubr.bf16.gmra.mxu0 %v128
    %v278 = vpop.f32.mrf.mxu0
    %v279 = vadd.f32 0.0, %v278
    %v280 = vpop.f32.mrf.mxu0
    %v281 = vpop.f32.mrf.mxu0
    %v282 = vadd.f32 0.0, %v281
    %v283 = vpop.f32.mrf.mxu0
    %284 = vmatprep.mubr.bf16.mxu0 0
    %285 = vmatmul.mubr.bf16.gmra.mxu0 %v129
    %v286 = vpop.f32.mrf.mxu0
    %v287 = vadd.f32 0.0, %v286
    %v288 = vpop.f32.mrf.mxu0
    %v289 = vpop.f32.mrf.mxu0
    %v290 = vadd.f32 0.0, %v289
    %v291 = vpop.f32.mrf.mxu0
    %292 = vmatprep.mubr.bf16.mxu0 0
    %293 = vmatmul.mubr.bf16.gmra.mxu0 %v130
    %v294 = vpop.f32.mrf.mxu0
    %v295 = vadd.f32 0.0, %v294
    %v296 = vpop.f32.mrf.mxu0
    %v297 = vpop.f32.mrf.mxu0
    %v298 = vadd.f32 0.0, %v297
    %v299 = vpop.f32.mrf.mxu0
    %300 = vmatprep.mubr.bf16.mxu0 0
    %301 = vmatmul.mubr.bf16.gmra.mxu0 %v131
    %v302 = vpop.f32.mrf.mxu0
    %v303 = vadd.f32 0.0, %v302
    %v304 = vpop.f32.mrf.mxu0
    %v305 = vpop.f32.mrf.mxu0
    %v306 = vadd.f32 0.0, %v305
    %v307 = vpop.f32.mrf.mxu0
    %308 = vdwg.mxu0
    %v309 = vadd.f32 %v132, %v247
    %v310 = vadd.f32 %v133, %v250
    %v311 = vadd.f32 %v134, %v255
    %v312 = vadd.f32 %v135, %v258
    %v313 = vadd.f32 %v136, %v263
    %v314 = vadd.f32 %v137, %v266
    %v315 = vadd.f32 %v138, %v271
    %v316 = vadd.f32 %v139, %v274
    %v317 = vadd.f32 %v140, %v279
    %v318 = vadd.f32 %v141, %v282
    %v319 = vadd.f32 %v142, %v287
    %v320 = vadd.f32 %v143, %v290
    %v321 = vadd.f32 %v144, %v295
    %v322 = vadd.f32 %v145, %v298
    %v323 = vadd.f32 %v146, %v303
    %v324 = vadd.f32 %v147, %v306
    %325 = vst [vmem:[#allocation2] sm:$0xff] %v309
    %326 = vst [vmem:[#allocation2 + $0x8] sm:$0xff] %v310
    %327 = vst [vmem:[#allocation2 + $0x10] sm:$0xff] %v311
    %328 = vst [vmem:[#allocation2 + $0x18] sm:$0xff] %v312
    %329 = vst [vmem:[#allocation2 + $0x20] sm:$0xff] %v313
    %330 = vst [vmem:[#allocation2 + $0x28] sm:$0xff] %v314
    %331 = vst [vmem:[#allocation2 + $0x30] sm:$0xff] %v315
    %332 = vst [vmem:[#allocation2 + $0x38] sm:$0xff] %v316
    %333 = vst [vmem:[#allocation2 + $0x40] sm:$0xff] %v317
    %334 = vst [vmem:[#allocation2 + $0x48] sm:$0xff] %v318
    %335 = vst [vmem:[#allocation2 + $0x50] sm:$0xff] %v319
    %336 = vst [vmem:[#allocation2 + $0x58] sm:$0xff] %v320
    %337 = vst [vmem:[#allocation2 + $0x60] sm:$0xff] %v321
    %338 = vst [vmem:[#allocation2 + $0x68] sm:$0xff] %v322
    %339 = vst [vmem:[#allocation2 + $0x70] sm:$0xff] %v323
    %340 = vst [vmem:[#allocation2 + $0x78] sm:$0xff] %v324
    // Predicated region
    $region58: #{tpu_custom_call.1} parent=1 // pred_check
      %p341 = pneg %p100
    $region59: #{tpu_custom_call.1} parent=1 // pred_check_branch
      %343 = sbr.rel (%p341) target = $region61
    $region60: #{tpu_custom_call.1} parent=1 // pred_region
      %v344 = vld [vmem:[#allocation2] sm:$0xff]
      %v345 = vld [vmem:[#allocation2 + $0x8] sm:$0xff]
      %v346 = vld [vmem:[#allocation2 + $0x10] sm:$0xff]
      %v347 = vld [vmem:[#allocation2 + $0x18] sm:$0xff]
      %v348 = vld [vmem:[#allocation2 + $0x20] sm:$0xff]
      %v349 = vld [vmem:[#allocation2 + $0x28] sm:$0xff]
      %v350 = vld [vmem:[#allocation2 + $0x30] sm:$0xff]
      %v351 = vld [vmem:[#allocation2 + $0x38] sm:$0xff]
      %v352 = vld [vmem:[#allocation2 + $0x40] sm:$0xff]
      %v353 = vld [vmem:[#allocation2 + $0x48] sm:$0xff]
      %v354 = vld [vmem:[#allocation2 + $0x50] sm:$0xff]
      %v355 = vld [vmem:[#allocation2 + $0x58] sm:$0xff]
      %v356 = vld [vmem:[#allocation2 + $0x60] sm:$0xff]
      %v357 = vld [vmem:[#allocation2 + $0x68] sm:$0xff]
      %v358 = vld [vmem:[#allocation2 + $0x70] sm:$0xff]
      %v359 = vld [vmem:[#allocation2 + $0x78] sm:$0xff]
      %s360 = sld [smem:[#allocation3]]
      %v361 = vld [vmem:[#allocation9] sm:$0xf]
      %v362 = vld [vmem:[#allocation9 + $0x4] sm:$0xf]
      %v363 = vld [vmem:[#allocation9 + $0x8] sm:$0xf]
      %v364 = vld [vmem:[#allocation9 + $0xc] sm:$0xf]
      %v365 = vld [vmem:[#allocation9 + $0x10] sm:$0xf]
      %v366 = vld [vmem:[#allocation9 + $0x14] sm:$0xf]
      %v367 = vld [vmem:[#allocation9 + $0x18] sm:$0xf]
      %v368 = vld [vmem:[#allocation9 + $0x1c] sm:$0xf]
      %v369 = vld [vmem:[#allocation9 + $0x20] sm:$0xf]
      %v370 = vld [vmem:[#allocation9 + $0x24] sm:$0xf]
      %v371 = vld [vmem:[#allocation9 + $0x28] sm:$0xf]
      %v372 = vld [vmem:[#allocation9 + $0x2c] sm:$0xf]
      %v373 = vld [vmem:[#allocation9 + $0x30] sm:$0xf]
      %v374 = vld [vmem:[#allocation9 + $0x34] sm:$0xf]
      %v375 = vld [vmem:[#allocation9 + $0x38] sm:$0xf]
      %v376 = vld [vmem:[#allocation9 + $0x3c] sm:$0xf]
      %v377 = vunpack.c.l.bf16 %v361
      %v378 = vunpack.c.l.bf16 %v362
      %v379 = vunpack.c.l.bf16 %v363
      %v380 = vunpack.c.l.bf16 %v364
      %v381 = vunpack.c.l.bf16 %v365
      %v382 = vunpack.c.l.bf16 %v366
      %v383 = vunpack.c.l.bf16 %v367
      %v384 = vunpack.c.l.bf16 %v368
      %v385 = vunpack.c.l.bf16 %v369
      %v386 = vunpack.c.l.bf16 %v370
      %v387 = vunpack.c.l.bf16 %v371
      %v388 = vunpack.c.l.bf16 %v372
      %v389 = vunpack.c.l.bf16 %v373
      %v390 = vunpack.c.l.bf16 %v374
      %v391 = vunpack.c.l.bf16 %v375
      %v392 = vunpack.c.l.bf16 %v376
      %v393 = vstv %s360
      %v394 = vmul.f32 %v393, %v377
      %v395 = vmul.f32 %v393, %v378
      %v396 = vmul.f32 %v393, %v379
      %v397 = vmul.f32 %v393, %v380
      %v398 = vmul.f32 %v393, %v381
      %v399 = vmul.f32 %v393, %v382
      %v400 = vmul.f32 %v393, %v383
      %v401 = vmul.f32 %v393, %v384
      %v402 = vmul.f32 %v393, %v385
      %v403 = vmul.f32 %v393, %v386
      %v404 = vmul.f32 %v393, %v387
      %v405 = vmul.f32 %v393, %v388
      %v406 = vmul.f32 %v393, %v389
      %v407 = vmul.f32 %v393, %v390
      %v408 = vmul.f32 %v393, %v391
      %v409 = vmul.f32 %v393, %v392
      %v410 = vadd.f32 %v344, %v394
      %v411 = vadd.f32 %v345, %v395
      %v412 = vadd.f32 %v346, %v396
      %v413 = vadd.f32 %v347, %v397
      %v414 = vadd.f32 %v348, %v398
      %v415 = vadd.f32 %v349, %v399
      %v416 = vadd.f32 %v350, %v400
      %v417 = vadd.f32 %v351, %v401
      %v418 = vadd.f32 %v352, %v402
      %v419 = vadd.f32 %v353, %v403
      %v420 = vadd.f32 %v354, %v404
      %v421 = vadd.f32 %v355, %v405
      %v422 = vadd.f32 %v356, %v406
      %v423 = vadd.f32 %v357, %v407
      %v424 = vadd.f32 %v358, %v408
      %v425 = vadd.f32 %v359, %v409
      %v426 = vpack.c.bf16 %v411, %v410
      %v427 = vpack.c.bf16 %v413, %v412
      %v428 = vpack.c.bf16 %v415, %v414
      %v429 = vpack.c.bf16 %v417, %v416
      %v430 = vpack.c.bf16 %v419, %v418
      %v431 = vpack.c.bf16 %v421, %v420
      %v432 = vpack.c.bf16 %v423, %v422
      %v433 = vpack.c.bf16 %v425, %v424
      %v434 = vld [vmem:[#allocation10] sm:$0xf]
      %v435 = vld [vmem:[#allocation10 + $0x4] sm:$0xf]
      %v436 = vld [vmem:[#allocation10 + $0x8] sm:$0xf]
      %v437 = vld [vmem:[#allocation10 + $0xc] sm:$0xf]
      %v438 = vld [vmem:[#allocation10 + $0x10] sm:$0xf]
      %v439 = vld [vmem:[#allocation10 + $0x14] sm:$0xf]
      %v440 = vld [vmem:[#allocation10 + $0x18] sm:$0xf]
      %v441 = vld [vmem:[#allocation10 + $0x1c] sm:$0xf]
      %v442 = vld [vmem:[#allocation10 + $0x20] sm:$0xf]
      %v443 = vld [vmem:[#allocation10 + $0x24] sm:$0xf]
      %v444 = vld [vmem:[#allocation10 + $0x28] sm:$0xf]
      %v445 = vld [vmem:[#allocation10 + $0x2c] sm:$0xf]
      %v446 = vld [vmem:[#allocation10 + $0x30] sm:$0xf]
      %v447 = vld [vmem:[#allocation10 + $0x34] sm:$0xf]
      %v448 = vld [vmem:[#allocation10 + $0x38] sm:$0xf]
      %v449 = vld [vmem:[#allocation10 + $0x3c] sm:$0xf]
      %v450 = vld [vmem:[%s5] sm:$0x1]
      %v452 = vlaneseq
      %v453 = vshrl.u32 %v452, 7
      %v454 = vsub.s32 0, %v453
      %v455 = vrot.slane %v450, %v454
      %v473 = vunpack.c.l.b16 %v434
      %v474 = vunpack.c.l.b16 %v435
      %v475 = vunpack.c.l.b16 %v436
      %v476 = vunpack.c.l.b16 %v437
      %v477 = vunpack.c.l.b16 %v438
      %v478 = vunpack.c.l.b16 %v439
      %v479 = vunpack.c.l.b16 %v440
      %v480 = vunpack.c.l.b16 %v441
      %v481 = vunpack.c.l.b16 %v442
      %v482 = vunpack.c.l.b16 %v443
      %v483 = vunpack.c.l.b16 %v444
      %v484 = vunpack.c.l.b16 %v445
      %v485 = vunpack.c.l.b16 %v446
      %v486 = vunpack.c.l.b16 %v447
      %v487 = vunpack.c.l.b16 %v448
      %v488 = vunpack.c.l.b16 %v449
      %v489 = vpack.c.b16 %v474, %v473
      %v490 = vpack.c.b16 %v476, %v475
      %v491 = vpack.c.b16 %v478, %v477
      %v492 = vpack.c.b16 %v480, %v479
      %v493 = vpack.c.b16 %v482, %v481
      %v494 = vpack.c.b16 %v484, %v483
      %v495 = vpack.c.b16 %v486, %v485
      %v496 = vpack.c.b16 %v488, %v487
      %505 = vmatprep.subr.bf16.mxu0 0
      %506 = vmatpush1.bf16.msra.mxu0 %v496
      %507 = vmatprep.subr.bf16.mxu0 0
      %508 = vmatpush1.bf16.msra.mxu0 %v495
      %509 = vmatprep.subr.bf16.mxu0 0
      %510 = vmatpush1.bf16.msra.mxu0 %v494
      %511 = vmatprep.subr.bf16.mxu0 0
      %512 = vmatpush1.bf16.msra.mxu0 %v493
      %513 = vmatprep.subr.bf16.mxu0 0
      %514 = vmatpush1.bf16.msra.mxu0 %v492
      %515 = vmatprep.subr.bf16.mxu0 0
      %516 = vmatpush1.bf16.msra.mxu0 %v491
      %517 = vmatprep.subr.bf16.mxu0 0
      %518 = vmatpush1.bf16.msra.mxu0 %v490
      %519 = vmatprep.subr.bf16.mxu0 0
      %520 = vmatpush1.bf16.msra.mxu0 %v489
      %521 = vmatprep.subr.bf16.mxu0 0
      %522 = vmatpush2.bf16.msra.mxu0 0
      %523 = vmatprep.subr.bf16.mxu0 0
      %524 = vmatpush2.bf16.msra.mxu0 0
      %525 = vmatprep.subr.bf16.mxu0 0
      %526 = vmatpush2.bf16.msra.mxu0 0
      %527 = vmatprep.subr.bf16.mxu0 0
      %528 = vmatpush2.bf16.msra.mxu0 0
      %529 = vmatprep.subr.bf16.mxu0 0
      %530 = vmatpush2.bf16.msra.mxu0 0
      %531 = vmatprep.subr.bf16.mxu0 0
      %532 = vmatpush2.bf16.msra.mxu0 0
      %533 = vmatprep.subr.bf16.mxu0 0
      %534 = vmatpush2.bf16.msra.mxu0 0
      %535 = vmatprep.subr.bf16.mxu0 0
      %536 = vmatpush2.bf16.msra.mxu0 0
      %537 = vmatprep.mubr.bf16.mxu0 0
      %538 = vmatmul.mubr.bf16.gmra.mxu0 %v426
      %v539 = vpop.f32.mrf.mxu0
      %v540 = vadd.f32 %v455, %v539
      %v541 = vpop.f32.mrf.mxu0
      %v542 = vpop.f32.mrf.mxu0
      %v543 = vadd.f32 %v455, %v542
      %v544 = vpop.f32.mrf.mxu0
      %545 = vmatprep.mubr.bf16.mxu0 0
      %546 = vmatmul.mubr.bf16.gmra.mxu0 %v427
      %v547 = vpop.f32.mrf.mxu0
      %v548 = vadd.f32 %v455, %v547
      %v549 = vpop.f32.mrf.mxu0
      %v550 = vpop.f32.mrf.mxu0
      %v551 = vadd.f32 %v455, %v550
      %v552 = vpop.f32.mrf.mxu0
      %553 = vmatprep.mubr.bf16.mxu0 0
      %554 = vmatmul.mubr.bf16.gmra.mxu0 %v428
      %v555 = vpop.f32.mrf.mxu0
      %v556 = vadd.f32 %v455, %v555
      %v557 = vpop.f32.mrf.mxu0
      %v558 = vpop.f32.mrf.mxu0
      %v559 = vadd.f32 %v455, %v558
      %v560 = vpop.f32.mrf.mxu0
      %561 = vmatprep.mubr.bf16.mxu0 0
      %562 = vmatmul.mubr.bf16.gmra.mxu0 %v429
      %v563 = vpop.f32.mrf.mxu0
      %v564 = vadd.f32 %v455, %v563
      %v565 = vpop.f32.mrf.mxu0
      %v566 = vpop.f32.mrf.mxu0
      %v567 = vadd.f32 %v455, %v566
      %v568 = vpop.f32.mrf.mxu0
      %569 = vmatprep.mubr.bf16.mxu0 0
      %570 = vmatmul.mubr.bf16.gmra.mxu0 %v430
      %v571 = vpop.f32.mrf.mxu0
      %v572 = vadd.f32 %v455, %v571
      %v573 = vpop.f32.mrf.mxu0
      %v574 = vpop.f32.mrf.mxu0
      %v575 = vadd.f32 %v455, %v574
      %v576 = vpop.f32.mrf.mxu0
      %577 = vmatprep.mubr.bf16.mxu0 0
      %578 = vmatmul.mubr.bf16.gmra.mxu0 %v431
      %v579 = vpop.f32.mrf.mxu0
      %v580 = vadd.f32 %v455, %v579
      %v581 = vpop.f32.mrf.mxu0
      %v582 = vpop.f32.mrf.mxu0
      %v583 = vadd.f32 %v455, %v582
      %v584 = vpop.f32.mrf.mxu0
      %585 = vmatprep.mubr.bf16.mxu0 0
      %586 = vmatmul.mubr.bf16.gmra.mxu0 %v432
      %v587 = vpop.f32.mrf.mxu0
      %v588 = vadd.f32 %v455, %v587
      %v589 = vpop.f32.mrf.mxu0
      %v590 = vpop.f32.mrf.mxu0
      %v591 = vadd.f32 %v455, %v590
      %v592 = vpop.f32.mrf.mxu0
      %593 = vmatprep.mubr.bf16.mxu0 0
      %594 = vmatmul.mubr.bf16.gmra.mxu0 %v433
      %v595 = vpop.f32.mrf.mxu0
      %v596 = vadd.f32 %v455, %v595
      %v597 = vpop.f32.mrf.mxu0
      %v598 = vpop.f32.mrf.mxu0
      %v599 = vadd.f32 %v455, %v598
      %v600 = vpop.f32.mrf.mxu0
      %601 = vdwg.mxu0
      %v602 = vmax.f32 %v540, 0.0
      %v603 = vmax.f32 %v543, 0.0
      %v604 = vmax.f32 %v548, 0.0
      %v605 = vmax.f32 %v551, 0.0
      %v606 = vmax.f32 %v556, 0.0
      %v607 = vmax.f32 %v559, 0.0
      %v608 = vmax.f32 %v564, 0.0
      %v609 = vmax.f32 %v567, 0.0
      %v610 = vmax.f32 %v572, 0.0
      %v611 = vmax.f32 %v575, 0.0
      %v612 = vmax.f32 %v580, 0.0
      %v613 = vmax.f32 %v583, 0.0
      %v614 = vmax.f32 %v588, 0.0
      %v615 = vmax.f32 %v591, 0.0
      %v616 = vmax.f32 %v596, 0.0
      %v617 = vmax.f32 %v599, 0.0
      %v618 = vpack.c.bf16 %v603, %v602
      %v619 = vpack.c.bf16 %v605, %v604
      %v620 = vpack.c.bf16 %v607, %v606
      %v621 = vpack.c.bf16 %v609, %v608
      %v622 = vpack.c.bf16 %v611, %v610
      %v623 = vpack.c.bf16 %v613, %v612
      %v624 = vpack.c.bf16 %v615, %v614
      %v625 = vpack.c.bf16 %v617, %v616
      %v626 = vld [vmem:[#allocation12] sm:$0xf]
      %v627 = vld [vmem:[#allocation12 + $0x4] sm:$0xf]
      %v628 = vld [vmem:[#allocation12 + $0x8] sm:$0xf]
      %v629 = vld [vmem:[#allocation12 + $0xc] sm:$0xf]
      %v630 = vld [vmem:[#allocation12 + $0x10] sm:$0xf]
      %v631 = vld [vmem:[#allocation12 + $0x14] sm:$0xf]
      %v632 = vld [vmem:[#allocation12 + $0x18] sm:$0xf]
      %v633 = vld [vmem:[#allocation12 + $0x1c] sm:$0xf]
      %v634 = vld [vmem:[#allocation12 + $0x20] sm:$0xf]
      %v635 = vld [vmem:[#allocation12 + $0x24] sm:$0xf]
      %v636 = vld [vmem:[#allocation12 + $0x28] sm:$0xf]
      %v637 = vld [vmem:[#allocation12 + $0x2c] sm:$0xf]
      %v638 = vld [vmem:[#allocation12 + $0x30] sm:$0xf]
      %v639 = vld [vmem:[#allocation12 + $0x34] sm:$0xf]
      %v640 = vld [vmem:[#allocation12 + $0x38] sm:$0xf]
      %v641 = vld [vmem:[#allocation12 + $0x3c] sm:$0xf]
      %v642 = vld [vmem:[%s7] sm:$0x1]
      %v644 = vlaneseq
      %v645 = vshrl.u32 %v644, 7
      %v646 = vsub.s32 0, %v645
      %v647 = vrot.slane %v642, %v646
      %v665 = vunpack.c.l.b16 %v626
      %v666 = vunpack.c.l.b16 %v627
      %v667 = vunpack.c.l.b16 %v628
      %v668 = vunpack.c.l.b16 %v629
      %v669 = vunpack.c.l.b16 %v630
      %v670 = vunpack.c.l.b16 %v631
      %v671 = vunpack.c.l.b16 %v632
      %v672 = vunpack.c.l.b16 %v633
      %v673 = vunpack.c.l.b16 %v634
      %v674 = vunpack.c.l.b16 %v635
      %v675 = vunpack.c.l.b16 %v636
      %v676 = vunpack.c.l.b16 %v637
      %v677 = vunpack.c.l.b16 %v638
      %v678 = vunpack.c.l.b16 %v639
      %v679 = vunpack.c.l.b16 %v640
      %v680 = vunpack.c.l.b16 %v641
      %v681 = vpack.c.b16 %v666, %v665
      %v682 = vpack.c.b16 %v668, %v667
      %v683 = vpack.c.b16 %v670, %v669
      %v684 = vpack.c.b16 %v672, %v671
      %v685 = vpack.c.b16 %v674, %v673
      %v686 = vpack.c.b16 %v676, %v675
      %v687 = vpack.c.b16 %v678, %v677
      %v688 = vpack.c.b16 %v680, %v679
      %697 = vmatprep.subr.bf16.mxu0 0
      %698 = vmatpush1.bf16.msra.mxu0 %v688
      %699 = vmatprep.subr.bf16.mxu0 0
      %700 = vmatpush1.bf16.msra.mxu0 %v687
      %701 = vmatprep.subr.bf16.mxu0 0
      %702 = vmatpush1.bf16.msra.mxu0 %v686
      %703 = vmatprep.subr.bf16.mxu0 0
      %704 = vmatpush1.bf16.msra.mxu0 %v685
      %705 = vmatprep.subr.bf16.mxu0 0
      %706 = vmatpush1.bf16.msra.mxu0 %v684
      %707 = vmatprep.subr.bf16.mxu0 0
      %708 = vmatpush1.bf16.msra.mxu0 %v683
      %709 = vmatprep.subr.bf16.mxu0 0
      %710 = vmatpush1.bf16.msra.mxu0 %v682
      %711 = vmatprep.subr.bf16.mxu0 0
      %712 = vmatpush1.bf16.msra.mxu0 %v681
      %713 = vmatprep.subr.bf16.mxu0 0
      %714 = vmatpush2.bf16.msra.mxu0 0
      %715 = vmatprep.subr.bf16.mxu0 0
      %716 = vmatpush2.bf16.msra.mxu0 0
      %717 = vmatprep.subr.bf16.mxu0 0
      %718 = vmatpush2.bf16.msra.mxu0 0
      %719 = vmatprep.subr.bf16.mxu0 0
      %720 = vmatpush2.bf16.msra.mxu0 0
      %721 = vmatprep.subr.bf16.mxu0 0
      %722 = vmatpush2.bf16.msra.mxu0 0
      %723 = vmatprep.subr.bf16.mxu0 0
      %724 = vmatpush2.bf16.msra.mxu0 0
      %725 = vmatprep.subr.bf16.mxu0 0
      %726 = vmatpush2.bf16.msra.mxu0 0
      %727 = vmatprep.subr.bf16.mxu0 0
      %728 = vmatpush2.bf16.msra.mxu0 0
      %729 = vmatprep.mubr.bf16.mxu0 0
      %730 = vmatmul.mubr.bf16.gmra.mxu0 %v618
      %v731 = vpop.f32.mrf.mxu0
      %v732 = vadd.f32 %v647, %v731
      %v733 = vpop.f32.mrf.mxu0
      %v734 = vpop.f32.mrf.mxu0
      %v735 = vadd.f32 %v647, %v734
      %v736 = vpop.f32.mrf.mxu0
      %737 = vmatprep.mubr.bf16.mxu0 0
      %738 = vmatmul.mubr.bf16.gmra.mxu0 %v619
      %v739 = vpop.f32.mrf.mxu0
      %v740 = vadd.f32 %v647, %v739
      %v741 = vpop.f32.mrf.mxu0
      %v742 = vpop.f32.mrf.mxu0
      %v743 = vadd.f32 %v647, %v742
      %v744 = vpop.f32.mrf.mxu0
      %745 = vmatprep.mubr.bf16.mxu0 0
      %746 = vmatmul.mubr.bf16.gmra.mxu0 %v620
      %v747 = vpop.f32.mrf.mxu0
      %v748 = vadd.f32 %v647, %v747
      %v749 = vpop.f32.mrf.mxu0
      %v750 = vpop.f32.mrf.mxu0
      %v751 = vadd.f32 %v647, %v750
      %v752 = vpop.f32.mrf.mxu0
      %753 = vmatprep.mubr.bf16.mxu0 0
      %754 = vmatmul.mubr.bf16.gmra.mxu0 %v621
      %v755 = vpop.f32.mrf.mxu0
      %v756 = vadd.f32 %v647, %v755
      %v757 = vpop.f32.mrf.mxu0
      %v758 = vpop.f32.mrf.mxu0
      %v759 = vadd.f32 %v647, %v758
      %v760 = vpop.f32.mrf.mxu0
      %761 = vmatprep.mubr.bf16.mxu0 0
      %762 = vmatmul.mubr.bf16.gmra.mxu0 %v622
      %v763 = vpop.f32.mrf.mxu0
      %v764 = vadd.f32 %v647, %v763
      %v765 = vpop.f32.mrf.mxu0
      %v766 = vpop.f32.mrf.mxu0
      %v767 = vadd.f32 %v647, %v766
      %v768 = vpop.f32.mrf.mxu0
      %769 = vmatprep.mubr.bf16.mxu0 0
      %770 = vmatmul.mubr.bf16.gmra.mxu0 %v623
      %v771 = vpop.f32.mrf.mxu0
      %v772 = vadd.f32 %v647, %v771
      %v773 = vpop.f32.mrf.mxu0
      %v774 = vpop.f32.mrf.mxu0
      %v775 = vadd.f32 %v647, %v774
      %v776 = vpop.f32.mrf.mxu0
      %777 = vmatprep.mubr.bf16.mxu0 0
      %778 = vmatmul.mubr.bf16.gmra.mxu0 %v624
      %v779 = vpop.f32.mrf.mxu0
      %v780 = vadd.f32 %v647, %v779
      %v781 = vpop.f32.mrf.mxu0
      %v782 = vpop.f32.mrf.mxu0
      %v783 = vadd.f32 %v647, %v782
      %v784 = vpop.f32.mrf.mxu0
      %785 = vmatprep.mubr.bf16.mxu0 0
      %786 = vmatmul.mubr.bf16.gmra.mxu0 %v625
      %v787 = vpop.f32.mrf.mxu0
      %v788 = vadd.f32 %v647, %v787
      %v789 = vpop.f32.mrf.mxu0
      %v790 = vpop.f32.mrf.mxu0
      %v791 = vadd.f32 %v647, %v790
      %v792 = vpop.f32.mrf.mxu0
      %793 = vdwg.mxu0
      %v794 = vmax.f32 %v732, 0.0
      %v795 = vmax.f32 %v735, 0.0
      %v796 = vmax.f32 %v740, 0.0
      %v797 = vmax.f32 %v743, 0.0
      %v798 = vmax.f32 %v748, 0.0
      %v799 = vmax.f32 %v751, 0.0
      %v800 = vmax.f32 %v756, 0.0
      %v801 = vmax.f32 %v759, 0.0
      %v802 = vmax.f32 %v764, 0.0
      %v803 = vmax.f32 %v767, 0.0
      %v804 = vmax.f32 %v772, 0.0
      %v805 = vmax.f32 %v775, 0.0
      %v806 = vmax.f32 %v780, 0.0
      %v807 = vmax.f32 %v783, 0.0
      %v808 = vmax.f32 %v788, 0.0
      %v809 = vmax.f32 %v791, 0.0
      %v810 = vpack.c.bf16 %v795, %v794
      %v811 = vpack.c.bf16 %v797, %v796
      %v812 = vpack.c.bf16 %v799, %v798
      %v813 = vpack.c.bf16 %v801, %v800
      %v814 = vpack.c.bf16 %v803, %v802
      %v815 = vpack.c.bf16 %v805, %v804
      %v816 = vpack.c.bf16 %v807, %v806
      %v817 = vpack.c.bf16 %v809, %v808
      %v826 = vunpack.c.l.b16 %v810
      %v827 = vunpack.c.h.b16 %v810
      %v828 = vunpack.c.l.b16 %v811
      %v829 = vunpack.c.h.b16 %v811
      %v830 = vunpack.c.l.b16 %v812
      %v831 = vunpack.c.h.b16 %v812
      %v832 = vunpack.c.l.b16 %v813
      %v833 = vunpack.c.h.b16 %v813
      %v834 = vunpack.c.l.b16 %v814
      %v835 = vunpack.c.h.b16 %v814
      %v836 = vunpack.c.l.b16 %v815
      %v837 = vunpack.c.h.b16 %v815
      %v838 = vunpack.c.l.b16 %v816
      %v839 = vunpack.c.h.b16 %v816
      %v840 = vunpack.c.l.b16 %v817
      %v841 = vunpack.c.h.b16 %v817
      %v842 = vpack.c.b16 %v826, %v826
      %v843 = vpack.c.b16 %v827, %v827
      %v844 = vpack.c.b16 %v828, %v828
      %v845 = vpack.c.b16 %v829, %v829
      %v846 = vpack.c.b16 %v830, %v830
      %v847 = vpack.c.b16 %v831, %v831
      %v848 = vpack.c.b16 %v832, %v832
      %v849 = vpack.c.b16 %v833, %v833
      %v850 = vpack.c.b16 %v834, %v834
      %v851 = vpack.c.b16 %v835, %v835
      %v852 = vpack.c.b16 %v836, %v836
      %v853 = vpack.c.b16 %v837, %v837
      %v854 = vpack.c.b16 %v838, %v838
      %v855 = vpack.c.b16 %v839, %v839
      %v856 = vpack.c.b16 %v840, %v840
      %v857 = vpack.c.b16 %v841, %v841
      %874 = vst [vmem:[#allocation13] sm:$0xf] %v842
      %875 = vst [vmem:[#allocation13 + $0x4] sm:$0xf] %v843
      %876 = vst [vmem:[#allocation13 + $0x8] sm:$0xf] %v844
      %877 = vst [vmem:[#allocation13 + $0xc] sm:$0xf] %v845
      %878 = vst [vmem:[#allocation13 + $0x10] sm:$0xf] %v846
      %879 = vst [vmem:[#allocation13 + $0x14] sm:$0xf] %v847
      %880 = vst [vmem:[#allocation13 + $0x18] sm:$0xf] %v848
      %881 = vst [vmem:[#allocation13 + $0x1c] sm:$0xf] %v849
      %882 = vst [vmem:[#allocation13 + $0x20] sm:$0xf] %v850
      %883 = vst [vmem:[#allocation13 + $0x24] sm:$0xf] %v851
      %884 = vst [vmem:[#allocation13 + $0x28] sm:$0xf] %v852
      %885 = vst [vmem:[#allocation13 + $0x2c] sm:$0xf] %v853
      %886 = vst [vmem:[#allocation13 + $0x30] sm:$0xf] %v854
      %887 = vst [vmem:[#allocation13 + $0x34] sm:$0xf] %v855
      %888 = vst [vmem:[#allocation13 + $0x38] sm:$0xf] %v856
      %889 = vst [vmem:[#allocation13 + $0x3c] sm:$0xf] %v857
    $region61: #{tpu_custom_call.1} parent=1 // pred_fallthru
      _
    // Predicated region
    $region62: #{tpu_custom_call.1} parent=1 // pred_check
      _
    $region63: #{tpu_custom_call.1} parent=1 // pred_check_branch
      %891 = sbr.rel (0) target = $region65
    $region64: #{tpu_custom_call.1} parent=1 // pred_region
      %s893 = ssub.s32 1024, 1024
      %894 = vsyncadd [#allocation6], %s893
      %s895 = sshll.u32 [#allocation13], 4
      %s896 = int_to_ptr.vmem [resolvable:$true] %s895
      %901 = dma.vmem_to_hbm [thread:$0]  %s896, 1024, %s8, [#allocation6], 64, 64, 4
    $region65: #{tpu_custom_call.1} parent=1 // pred_fallthru
      _
    // Predicated region
    $region66: #{tpu_custom_call.1} parent=1 // pred_check
      _
    $region67: #{tpu_custom_call.1} parent=1 // pred_check_branch
      %903 = sbr.rel (0) target = $region69
    $region68: #{tpu_custom_call.1} parent=1 // pred_region
      %904 = dma.done [#allocation6], 1024
    $region69: #{tpu_custom_call.1} parent=1 // pred_fallthru
      _
    %905 = vsyncpa [#allocation5], 1
    %906 = vsyncpa [#allocation8], 1
    %907 = vsyncpa [#allocation11], 1
    %908 = vsyncpa [#allocation6], 1

</llo_original>
